<compile_context>
chip_gen: v5e
topology: v5e:2x2
jax: 0.10.0
libtpu: 0.0.40
codegen_flags: <defaults>
</compile_context>

<pallas_src>
import functools

import jax
import jax.numpy as jnp
import numpy as np
from jax import lax
from jax.experimental import pallas as pl
from jax.experimental.pallas import tpu as pltpu

EPS = 1e-5      # PyTorch BatchNorm2d default eps
LANES = 128     # TPU lane width; channel dims are padded to a multiple of this


def _round_up(x, m):
    return ((x + m - 1) // m) * m


# ---------------------------------------------------------------------------
# Pallas kernel 1: streaming per-channel BatchNorm statistics (sum, sum^2)
# ---------------------------------------------------------------------------
def _bn_stats_kernel(x_ref, sum_ref, ssq_ref, *, m_total, tile_m, needs_mask):
    i = pl.program_id(0)

    @pl.when(i == 0)
    def _init():
        sum_ref[...] = jnp.zeros_like(sum_ref)
        ssq_ref[...] = jnp.zeros_like(ssq_ref)

    x = x_ref[...]                                           # (tile_m, Cp)

    if needs_mask:
        last = pl.num_programs(0) - 1

        @pl.when(i == last)
        def _masked():
            # Only the final tile can read Pallas-padded rows; mask them
            # BEFORE squaring so garbage never enters the sums.
            row = lax.broadcasted_iota(jnp.int32, x.shape, 0) + i * tile_m
            xm = jnp.where(row < m_total, x, 0.0)
            sum_ref[...] += jnp.sum(xm, axis=0, keepdims=True)
            ssq_ref[...] += jnp.sum(xm * xm, axis=0, keepdims=True)

        @pl.when(i < last)
        def _full():
            sum_ref[...] += jnp.sum(x, axis=0, keepdims=True)
            ssq_ref[...] += jnp.sum(x * x, axis=0, keepdims=True)
    else:
        sum_ref[...] += jnp.sum(x, axis=0, keepdims=True)
        ssq_ref[...] += jnp.sum(x * x, axis=0, keepdims=True)


def bn_batch_stats(x_flat, *, tile_m=1024):
    """Per-channel (sum, sum of squares) of a (M, Cp) array, tiled over M."""
    M, Cp = x_flat.shape
    tm = min(tile_m, _round_up(M, 8))
    grid_m = pl.cdiv(M, tm)
    needs_mask = (M % tm) != 0
    kern = functools.partial(_bn_stats_kernel, m_total=M, tile_m=tm,
                             needs_mask=needs_mask)
    return pl.pallas_call(
        kern,
        out_shape=(jax.ShapeDtypeStruct((1, Cp), jnp.float32),
                   jax.ShapeDtypeStruct((1, Cp), jnp.float32)),
        grid=(grid_m,),
        in_specs=[pl.BlockSpec((tm, Cp), lambda i: (i, 0))],
        out_specs=(pl.BlockSpec((1, Cp), lambda i: (0, 0)),
                   pl.BlockSpec((1, Cp), lambda i: (0, 0))),
        compiler_params=pltpu.CompilerParams(
            dimension_semantics=("arbitrary",)),     # reduction axis
    )(x_flat)


# ---------------------------------------------------------------------------
# Pallas kernel 2: fused BN-normalize + ReLU + act-quant + 3x3 conv
#                  (+ optional fused residual add, + optional fused next-BN
#                   statistics emitted from the f32 accumulator)
# ---------------------------------------------------------------------------
def _fused_bn_act_conv_kernel(*refs, H, W, a_bit, has_residual, emit_stats):
    """Processes one image: normalize (precomputed batch-stat scale/shift),
    ReLU, DoReFa activation quantization into a VMEM halo scratch, then a
    3x3 / pad=1 / stride=1 conv done as ONE im2col bf16 MXU matmul with f32
    accumulation (K = 9*Cp)."""
    if has_residual:
        x_ref, w_ref, scale_ref, shift_ref, res_ref = refs[:5]
        rest = refs[5:]
    else:
        x_ref, w_ref, scale_ref, shift_ref = refs[:4]
        res_ref = None
        rest = refs[4:]
    if emit_stats:
        o_ref, sum_ref, ssq_ref, pad_ref = rest
    else:
        o_ref, pad_ref = rest
        sum_ref = ssq_ref = None

    Cp = x_ref.shape[-1]
    Cop = o_ref.shape[-1]

    # ---- fused prologue: BN affine + ReLU + activation quantization -------
    x = x_ref[0].astype(jnp.float32)               # (H, W, Cp)
    y = x * scale_ref[...] + shift_ref[...]        # (1,1,Cp) broadcast
    y = jnp.maximum(y, 0.0)
    if a_bit != 32:
        n = float(2 ** a_bit - 1)
        y = jnp.round(jnp.clip(y, 0.0, 1.0) * n) * (1.0 / n)
    y = y.astype(jnp.bfloat16)                     # bf16 MXU operand

    # ---- write into the VMEM halo scratch (no HBM-level spatial pad) ------
    zrow = jnp.zeros((1, W + 2, Cp), jnp.bfloat16)
    pad_ref[0:1, :, :] = zrow
    pad_ref[H + 1:H + 2, :, :] = zrow
    zcol = jnp.zeros((H, 1, Cp), jnp.bfloat16)
    pad_ref[1:H + 1, 0:1, :] = zcol
    pad_ref[1:H + 1, W + 1:W + 2, :] = zcol
    pad_ref[1:H + 1, 1:W + 1, :] = y

    # ---- 3x3 conv as a single im2col matmul (K = 9*Cp) --------------------
    ypad = pad_ref[...]                            # (H+2, W+2, Cp) bf16
    cols = []
    for kh in range(3):
        for kw in range(3):
            cols.append(lax.slice(ypad, (kh, kw, 0), (kh + H, kw + W, Cp)))
    patch = jnp.concatenate(cols, axis=-1).reshape(H * W, 9 * Cp)
    acc = jnp.dot(patch, w_ref[...], preferred_element_type=jnp.float32)

    if res_ref is not None:
        acc = acc + res_ref[0]                     # fused residual add

    if sum_ref is not None:
        # Fused next-BatchNorm statistics from the f32 accumulator (per image;
        # the N-reduction finishes in plain JAX).
        sum_ref[0] = jnp.sum(acc, axis=0, keepdims=True)
        ssq_ref[0] = jnp.sum(acc * acc, axis=0, keepdims=True)

    o_ref[0] = acc.astype(o_ref.dtype)             # lane-dense (H*W, Cop)


def fused_bn_act_conv(x_nhwc, wmat, scale, shift, *, a_bit, residual=None,
                      emit_stats=False, out_dtype=jnp.float32):
    N, H, W, Cp = x_nhwc.shape
    Cop = wmat.shape[-1]
    kern = functools.partial(_fused_bn_act_conv_kernel, H=H, W=W, a_bit=a_bit,
                             has_residual=residual is not None,
                             emit_stats=emit_stats)
    in_specs = [
        pl.BlockSpec((1, H, W, Cp), lambda n: (n, 0, 0, 0)),
        pl.BlockSpec((9 * Cp, Cop), lambda n: (0, 0)),
        pl.BlockSpec((1, 1, Cp), lambda n: (0, 0, 0)),
        pl.BlockSpec((1, 1, Cp), lambda n: (0, 0, 0)),
    ]
    args = [x_nhwc, wmat, scale, shift]
    if residual is not None:
        in_specs.append(pl.BlockSpec((1, H * W, Cp), lambda n: (n, 0, 0)))
        args.append(residual)

    if emit_stats:
        out_shape = (jax.ShapeDtypeStruct((N, H * W, Cop), out_dtype),
                     jax.ShapeDtypeStruct((N, 1, Cop), jnp.float32),
                     jax.ShapeDtypeStruct((N, 1, Cop), jnp.float32))
        out_specs = (pl.BlockSpec((1, H * W, Cop), lambda n: (n, 0, 0)),
                     pl.BlockSpec((1, 1, Cop), lambda n: (n, 0, 0)),
                     pl.BlockSpec((1, 1, Cop), lambda n: (n, 0, 0)))
    else:
        out_shape = jax.ShapeDtypeStruct((N, H * W, Cop), out_dtype)
        out_specs = pl.BlockSpec((1, H * W, Cop), lambda n: (n, 0, 0))

    return pl.pallas_call(
        kern,
        out_shape=out_shape,
        grid=(N,),
        in_specs=in_specs,
        out_specs=out_specs,
        scratch_shapes=[pltpu.VMEM((H + 2, W + 2, Cp), jnp.bfloat16)],
        compiler_params=pltpu.CompilerParams(
            dimension_semantics=("parallel",),      # shard images across TCs
            vmem_limit_bytes=32 * 1024 * 1024),
    )(*args)


# ---------------------------------------------------------------------------
# Plain-JAX glue: DoReFa weight quant, weight packing, BN finalize, forward
# ---------------------------------------------------------------------------
def quantize_weight(w, w_bit):
    """DoReFa weight quantization (parameter prep, plain JAX)."""
    if w_bit == 32:
        return w
    if w_bit == 1:
        return jnp.sign(w) * jnp.mean(jnp.abs(w))
    n = float(2 ** w_bit - 1)
    wt = jnp.tanh(w)
    wt = wt / (2.0 * jnp.max(jnp.abs(wt))) + 0.5
    return 2.0 * (jnp.round(wt * n) / n) - 1.0


def _pack_weight_im2col(w_q, cin_p, cout_p):
    """(Cout, Cin, 3, 3) -> (9*cin_p, cout_p) bf16.
    Row index = (kh*3 + kw)*cin_p + ci, matching the in-kernel concat order."""
    co, ci = w_q.shape[0], w_q.shape[1]
    w = jnp.transpose(w_q, (2, 3, 1, 0))           # (3, 3, Cin, Cout)
    w = jnp.pad(w, ((0, 0), (0, 0), (0, cin_p - ci), (0, cout_p - co)))
    return w.reshape(9 * cin_p, cout_p).astype(jnp.bfloat16)


def _pad_vec(v, cp):
    return jnp.pad(v.astype(jnp.float32), (0, cp - v.shape[0]))


def _bn_finalize(s, ssq, count, gamma, beta):
    """Turn streaming sums into the per-channel affine scale/shift."""
    mean = s / count
    var = jnp.maximum(ssq / count - mean * mean, 0.0)   # E[x^2]-E[x]^2, f32
    scale = gamma / jnp.sqrt(var + EPS)
    shift = beta - mean * scale
    cp = scale.shape[0]
    return (scale.reshape(1, 1, cp).astype(jnp.float32),
            shift.reshape(1, 1, cp).astype(jnp.float32))


def basic_block_forward(x_nchw, params, *, stride=1, w_bit=32, a_bit=32):
    """BasicBlock forward (downsample=None), training-mode BatchNorm."""
    N, Cin, H, W = x_nchw.shape
    planes = params["conv1_w"].shape[0]
    # TODO(synk): stride>1 / downsample residual path is not implemented; the
    # downsample=None block requires stride==1 and planes == inplanes.
    assert stride == 1 and planes == Cin

    Cp = _round_up(max(Cin, planes), LANES)        # lane-dense channel padding
    M = N * H * W

    # Boundary layout glue (cheap, plain JAX): NCHW -> NHWC, channel pad.
    # TODO(synk): keep NHWC/padded layout across consecutive blocks so this
    # transpose/pad/slice happens only at the network stem/head.
    x = jnp.transpose(x_nchw, (0, 2, 3, 1)).astype(jnp.float32)
    x = jnp.pad(x, ((0, 0), (0, 0), (0, 0), (0, Cp - Cin)))

    # ---- bn1 batch statistics (Pallas streaming reduction) ----------------
    s1, q1 = bn_batch_stats(x.reshape(M, Cp))
    scale1, shift1 = _bn_finalize(s1[0], q1[0], M,
                                  _pad_vec(params["bn1_gamma"], Cp),
                                  _pad_vec(params["bn1_beta"], Cp))

    # ---- conv1: fused normalize/ReLU/act-quant + im2col MXU conv ----------
    # bn2 statistics are emitted from the f32 accumulator inside the kernel;
    # y1 is stored bf16 (halves the intermediate HBM traffic).
    w1m = _pack_weight_im2col(quantize_weight(params["conv1_w"], w_bit), Cp, Cp)
    y1, s2n, q2n = fused_bn_act_conv(x, w1m, scale1, shift1, a_bit=a_bit,
                                     emit_stats=True, out_dtype=jnp.bfloat16)
    s2 = jnp.sum(s2n, axis=(0, 1))                 # finish N-reduction (Cp,)
    q2 = jnp.sum(q2n, axis=(0, 1))
    scale2, shift2 = _bn_finalize(s2, q2, M,
                                  _pad_vec(params["bn2_gamma"], Cp),
                                  _pad_vec(params["bn2_beta"], Cp))

    # ---- conv2 + fused residual add ----------------------------------------
    w2m = _pack_weight_im2col(quantize_weight(params["conv2_w"], w_bit), Cp, Cp)
    out = fused_bn_act_conv(y1.reshape(N, H, W, Cp), w2m, scale2, shift2,
                            a_bit=a_bit, residual=x.reshape(N, H * W, Cp),
                            out_dtype=jnp.float32)

    out = out.reshape(N, H, W, Cp)[..., :planes]
    return jnp.transpose(out, (0, 3, 1, 2))        # back to NCHW


# ---------------------------------------------------------------------------
# Pure-JAX reference (mirrors the kernel's numerical scheme: batch-stat BN,
# DoReFa quant, bf16 MXU operands / bf16 y1 storage, f32 accumulation).
# ---------------------------------------------------------------------------
def reference_forward(x_nchw, params, *, stride, w_bit, a_bit):
    assert stride == 1

    def bn_affine(x, gamma, beta):
        mean = jnp.mean(x, axis=(0, 2, 3))
        var = jnp.maximum(jnp.mean(x * x, axis=(0, 2, 3)) - mean * mean, 0.0)
        scale = gamma / jnp.sqrt(var + EPS)
        shift = beta - mean * scale
        return scale.reshape(1, -1, 1, 1), shift.reshape(1, -1, 1, 1)

    def relu_q(y):
        y = jnp.maximum(y, 0.0)
        if a_bit != 32:
            n = float(2 ** a_bit - 1)
            y = jnp.round(jnp.clip(y, 0.0, 1.0) * n) * (1.0 / n)
        return y

    def conv(x, w):
        return lax.conv_general_dilated(
            x.astype(jnp.bfloat16), w.astype(jnp.bfloat16), (1, 1),
            ((1, 1), (1, 1)), dimension_numbers=("NCHW", "OIHW", "NCHW"),
            preferred_element_type=jnp.float32)

    residual = x_nchw
    sc1, sh1 = bn_affine(x_nchw, params["bn1_gamma"], params["bn1_beta"])
    h = relu_q(x_nchw * sc1 + sh1)
    h = conv(h, quantize_weight(params["conv1_w"], w_bit))
    # bn2 statistics from the f32 conv output; the normalization path mirrors
    # the kernel's bf16 storage of the intermediate activation.
    sc2, sh2 = bn_affine(h, params["bn2_gamma"], params["bn2_beta"])
    hb = h.astype(jnp.bfloat16).astype(jnp.float32)
    h = relu_q(hb * sc2 + sh2)
    h = conv(h, quantize_weight(params["conv2_w"], w_bit))
    return h + residual


if __name__ == "__main__":
    key = jax.random.PRNGKey(0)
    k1, k2, k3, k4, k5, k6, k7 = jax.random.split(key, 7)

    N, C, H, W = 2, 4, 16, 16
    planes = 4
    stride = 1
    wbits, abits = 4, 4   # DoReFa quantized conv weights / activations

    x = jax.random.normal(k1, (N, C, H, W), jnp.float32)
    params = {
        "bn1_gamma": jax.random.uniform(k2, (C,), jnp.float32, 0.5, 1.5),
        "bn1_beta": 0.1 * jax.random.normal(k3, (C,), jnp.float32),
        "conv1_w": 0.2 * jax.random.normal(k4, (planes, C, 3, 3), jnp.float32),
        "bn2_gamma": jax.random.uniform(k5, (planes,), jnp.float32, 0.5, 1.5),
        "bn2_beta": 0.1 * jax.random.normal(k6, (planes,), jnp.float32),
        "conv2_w": 0.2 * jax.random.normal(k7, (planes, planes, 3, 3),
                                           jnp.float32),
    }

    out = basic_block_forward(x, params, stride=stride,
                              w_bit=wbits, a_bit=abits)
    out = jax.block_until_ready(out)
    assert out.shape == (N, planes, H, W)

    ref = reference_forward(x, params, stride=stride,
                            w_bit=wbits, a_bit=abits)
    # Tolerance absorbs bf16/f32 accumulation-order differences and the (rare)
    # DoReFa rounding-boundary flip caused by differing BN-stat summation order.
    np.testing.assert_allclose(np.asarray(out), np.asarray(ref),
                               rtol=2e-2, atol=2e-2)
    print("KERNEL_OK")
</pallas_src>

<mosaic_0001>
module attributes {stable_mosaic.version = 11 : i64} {
  func.func @_bn_stats_kernel(%arg0: i32, %arg1: memref<512x128xf32, #tpu.memory_space<vmem>>, %arg2: memref<1x128xf32, #tpu.memory_space<vmem>>, %arg3: memref<1x128xf32, #tpu.memory_space<vmem>>) attributes {dimension_semantics = [#tpu.dimension_semantics<arbitrary>], iteration_bounds = array<i64: 1>, scalar_prefetch = 0 : i64, scratch_operands = 0 : i64, tpu.core_type = #tpu.core_type<tc>, window_params = [{transform_indices = @transform_0, window_bounds = array<i64: 512, 128>}, {pipeline_mode = #tpu.pipeline_mode<synchronous>, transform_indices = @transform_1, window_bounds = array<i64: 1, 128>}, {pipeline_mode = #tpu.pipeline_mode<synchronous>, transform_indices = @transform_2, window_bounds = array<i64: 1, 128>}]} {
    %c0_i32 = arith.constant 0 : i32
    %0 = arith.cmpi eq, %arg0, %c0_i32 : i32
    %1 = arith.extui %0 : i1 to i32
    %c0_i32_0 = arith.constant 0 : i32
    %2 = arith.cmpi ne, %1, %c0_i32_0 : i32
    scf.if %2 {
      %cst_11 = arith.constant 0.000000e+00 : f32
      %15 = vector.broadcast %cst_11 : f32 to vector<1x128xf32>
      %c0_12 = arith.constant 0 : index
      %c0_13 = arith.constant 0 : index
      %16 = vector.load %arg2[%c0_12, %c0_13] : memref<1x128xf32, #tpu.memory_space<vmem>>, vector<1x128xf32>
      tpu.vector_store %arg2[%c0_12, %c0_13], %15 {strides = array<i32>} : memref<1x128xf32, #tpu.memory_space<vmem>>, vector<1x128xf32>,
      %cst_14 = arith.constant 0.000000e+00 : f32
      %17 = vector.broadcast %cst_14 : f32 to vector<1x128xf32>
      %c0_15 = arith.constant 0 : index
      %c0_16 = arith.constant 0 : index
      %18 = vector.load %arg3[%c0_15, %c0_16] : memref<1x128xf32, #tpu.memory_space<vmem>>, vector<1x128xf32>
      tpu.vector_store %arg3[%c0_15, %c0_16], %17 {strides = array<i32>} : memref<1x128xf32, #tpu.memory_space<vmem>>, vector<1x128xf32>,
    } else {
    }
    %c0 = arith.constant 0 : index
    %c0_1 = arith.constant 0 : index
    %3 = vector.load %arg1[%c0, %c0_1] : memref<512x128xf32, #tpu.memory_space<vmem>>, vector<512x128xf32>
    %c0_2 = arith.constant 0 : index
    %c0_3 = arith.constant 0 : index
    %4 = vector.load %arg2[%c0_2, %c0_3] : memref<1x128xf32, #tpu.memory_space<vmem>>, vector<1x128xf32>
    %cst = arith.constant dense<0.000000e+00> : vector<128xf32>
    %5 = vector.multi_reduction <add>, %3, %cst [0] : vector<512x128xf32> to vector<128xf32>
    %6 = vector.shape_cast %5 : vector<128xf32> to vector<1x128xf32>
    %7 = arith.addf %4, %6 : vector<1x128xf32>
    %c0_4 = arith.constant 0 : index
    %c0_5 = arith.constant 0 : index
    %8 = vector.load %arg2[%c0_4, %c0_5] : memref<1x128xf32, #tpu.memory_space<vmem>>, vector<1x128xf32>
    tpu.vector_store %arg2[%c0_4, %c0_5], %7 {strides = array<i32>} : memref<1x128xf32, #tpu.memory_space<vmem>>, vector<1x128xf32>,
    %c0_6 = arith.constant 0 : index
    %c0_7 = arith.constant 0 : index
    %9 = vector.load %arg3[%c0_6, %c0_7] : memref<1x128xf32, #tpu.memory_space<vmem>>, vector<1x128xf32>
    %10 = arith.mulf %3, %3 : vector<512x128xf32>
    %cst_8 = arith.constant dense<0.000000e+00> : vector<128xf32>
    %11 = vector.multi_reduction <add>, %10, %cst_8 [0] : vector<512x128xf32> to vector<128xf32>
    %12 = vector.shape_cast %11 : vector<128xf32> to vector<1x128xf32>
    %13 = arith.addf %9, %12 : vector<1x128xf32>
    %c0_9 = arith.constant 0 : index
    %c0_10 = arith.constant 0 : index
    %14 = vector.load %arg3[%c0_9, %c0_10] : memref<1x128xf32, #tpu.memory_space<vmem>>, vector<1x128xf32>
    tpu.vector_store %arg3[%c0_9, %c0_10], %13 {strides = array<i32>} : memref<1x128xf32, #tpu.memory_space<vmem>>, vector<1x128xf32>,
    return
  }
  func.func @transform_0(%arg0: i32) -> (i32, i32) {
    %c0_i32 = arith.constant 0 : i32
    %c0_i32_0 = arith.constant 0 : i32
    return %arg0, %c0_i32 : i32, i32
  }
  func.func @transform_1(%arg0: i32) -> (i32, i32) {
    %c0_i32 = arith.constant 0 : i32
    %c0_i32_0 = arith.constant 0 : i32
    %c0_i32_1 = arith.constant 0 : i32
    return %c0_i32, %c0_i32_0 : i32, i32
  }
  func.func @transform_2(%arg0: i32) -> (i32, i32) {
    %c0_i32 = arith.constant 0 : i32
    %c0_i32_0 = arith.constant 0 : i32
    %c0_i32_1 = arith.constant 0 : i32
    return %c0_i32, %c0_i32_0 : i32, i32
  }
}

</mosaic_0001>

<llo_original>
// kernel: tpu_custom_call.1
$region0: #{tpu_custom_call.1}
  #allocation0 [shape = 'u32[]', space=smem, size = 0x4, offset = 0x4, fixed_abs, tag = 'smem constant byte address 0x4 - core index']
  #allocation1 [shape = 'u32[72,128]{1,0:T(1,128)}', space=vmem, size = 0x9000, scoped, tag = 'internal scratch']
  %s0 = inlined_call_operand.hbm [shape: f32[512,128], index: 0, kind: input, shape index: {}]
  %s1 = inlined_call_operand.hbm [shape: f32[1,128], index: 1, kind: output, shape index: {0}]
  %s2 = inlined_call_operand.hbm [shape: f32[1,128], index: 2, kind: output, shape index: {1}]
  %3 = xla_tuple %s1, %s2
  %s4 = sld [smem:[#allocation0]]
  $region30: #{tpu_custom_call.1} parent=0
    _
  %s6 = ssub.s32 1, %s4
  %s7 = scalar_select 0, %s6, %s4
  $region1: #{tpu_custom_call.1} parent=0
    #allocation2 [shape = 'u8[262144]{0}', space=vmem, size = 0x40000, scoped, tag = 'input window, operand 0, single buffered']
    #allocation3 [shape = 's32[1]{0}', space=sflag, size = 0x4, scoped, tag = 'scoped memory for tpu_custom_call.1']
    #allocation4 [shape = 's32[1]{0}', space=sflag, size = 0x4, scoped, tag = 'scoped memory for tpu_custom_call.1']
    #allocation5 [shape = 'u8[512]{0}', space=vmem, size = 0x400, scoped, tag = 'output window, operand 0, single buffered']
    #allocation6 [shape = 'u8[512]{0}', space=vmem, size = 0x400, scoped, tag = 'output window, operand 1, single buffered']
    #allocation7 [shape = 's32[1]{0}', space=sflag, size = 0x4, scoped, tag = 'scoped memory for tpu_custom_call.1']
    %8 = vsyncpa [#allocation3], 0
    %9 = vsyncpa [#allocation4], 0
    %10 = vsyncpa [#allocation7], 0
    // Predicated region
    $region2: #{tpu_custom_call.1} parent=1 // pred_check
      _
    $region3: #{tpu_custom_call.1} parent=1 // pred_check_branch
      %12 = sbr.rel (0) target = $region5
    $region4: #{tpu_custom_call.1} parent=1 // pred_region
      %14 = vsyncadd [#allocation3], 0
      %s15 = sshll.u32 %s0, 4
      %s16 = int_to_ptr.hbm [resolvable:$true] %s15
      %s17 = sshll.u32 [#allocation2], 4
      %s18 = int_to_ptr.vmem [resolvable:$true] %s17
      %23 = dma.hbm_to_vmem [thread:$0]  %s16, 8192, %s18, [#allocation3], 128, 128, 8
    $region5: #{tpu_custom_call.1} parent=1 // pred_fallthru
      _
    // Predicated region
    $region6: #{tpu_custom_call.1} parent=1 // pred_check
      _
    $region7: #{tpu_custom_call.1} parent=1 // pred_check_branch
      %25 = sbr.rel (0) target = $region9
    $region8: #{tpu_custom_call.1} parent=1 // pred_region
      %27 = dma.done [#allocation3], 8192
    $region9: #{tpu_custom_call.1} parent=1 // pred_fallthru
      _
    %p28 = scmp.eq.s32.totalorder 0, 0
    // Predicated region
    $region10: #{tpu_custom_call.1} parent=1 // pred_check
      %p29 = pneg %p28
    $region11: #{tpu_custom_call.1} parent=1 // pred_check_branch
      %31 = sbr.rel (%p29) target = $region13
    $region12: #{tpu_custom_call.1} parent=1 // pred_region
      %32 = vst [vmem:[#allocation5] sm:$0x1] 0.0
      %33 = vst [vmem:[#allocation6] sm:$0x1] 0.0
    $region13: #{tpu_custom_call.1} parent=1 // pred_fallthru
      _
    %v34 = vld [vmem:[#allocation2] sm:$0xff]
    %v35 = vld [vmem:[#allocation2 + $0x8] sm:$0xff]
    %v36 = vld [vmem:[#allocation2 + $0x10] sm:$0xff]
    %v37 = vld [vmem:[#allocation2 + $0x18] sm:$0xff]
    %v38 = vld [vmem:[#allocation2 + $0x20] sm:$0xff]
    %v39 = vld [vmem:[#allocation2 + $0x28] sm:$0xff]
    %v40 = vld [vmem:[#allocation2 + $0x30] sm:$0xff]
    %v41 = vld [vmem:[#allocation2 + $0x38] sm:$0xff]
    %v42 = vld [vmem:[#allocation2 + $0x40] sm:$0xff]
    %v43 = vld [vmem:[#allocation2 + $0x48] sm:$0xff]
    %v44 = vld [vmem:[#allocation2 + $0x50] sm:$0xff]
    %v45 = vld [vmem:[#allocation2 + $0x58] sm:$0xff]
    %v46 = vld [vmem:[#allocation2 + $0x60] sm:$0xff]
    %v47 = vld [vmem:[#allocation2 + $0x68] sm:$0xff]
    %v48 = vld [vmem:[#allocation2 + $0x70] sm:$0xff]
    %v49 = vld [vmem:[#allocation2 + $0x78] sm:$0xff]
    %v50 = vld [vmem:[#allocation2 + $0x80] sm:$0xff]
    %v51 = vld [vmem:[#allocation2 + $0x88] sm:$0xff]
    %v52 = vld [vmem:[#allocation2 + $0x90] sm:$0xff]
    %v53 = vld [vmem:[#allocation2 + $0x98] sm:$0xff]
    %v54 = vld [vmem:[#allocation2 + $0xa0] sm:$0xff]
    %v55 = vld [vmem:[#allocation2 + $0xa8] sm:$0xff]
    %v56 = vld [vmem:[#allocation2 + $0xb0] sm:$0xff]
    %v57 = vld [vmem:[#allocation2 + $0xb8] sm:$0xff]
    %v58 = vld [vmem:[#allocation2 + $0xc0] sm:$0xff]
    %v59 = vld [vmem:[#allocation2 + $0xc8] sm:$0xff]
    %v60 = vld [vmem:[#allocation2 + $0xd0] sm:$0xff]
    %v61 = vld [vmem:[#allocation2 + $0xd8] sm:$0xff]
    %v62 = vld [vmem:[#allocation2 + $0xe0] sm:$0xff]
    %v63 = vld [vmem:[#allocation2 + $0xe8] sm:$0xff]
    %v64 = vld [vmem:[#allocation2 + $0xf0] sm:$0xff]
    %v65 = vld [vmem:[#allocation2 + $0xf8] sm:$0xff]
    %v66 = vld [vmem:[#allocation2 + $0x100] sm:$0xff]
    %v67 = vld [vmem:[#allocation2 + $0x108] sm:$0xff]
    %v68 = vld [vmem:[#allocation2 + $0x110] sm:$0xff]
    %v69 = vld [vmem:[#allocation2 + $0x118] sm:$0xff]
    %v70 = vld [vmem:[#allocation2 + $0x120] sm:$0xff]
    %v71 = vld [vmem:[#allocation2 + $0x128] sm:$0xff]
    %v72 = vld [vmem:[#allocation2 + $0x130] sm:$0xff]
    %v73 = vld [vmem:[#allocation2 + $0x138] sm:$0xff]
    %v74 = vld [vmem:[#allocation2 + $0x140] sm:$0xff]
    %v75 = vld [vmem:[#allocation2 + $0x148] sm:$0xff]
    %v76 = vld [vmem:[#allocation2 + $0x150] sm:$0xff]
    %v77 = vld [vmem:[#allocation2 + $0x158] sm:$0xff]
    %v78 = vld [vmem:[#allocation2 + $0x160] sm:$0xff]
    %v79 = vld [vmem:[#allocation2 + $0x168] sm:$0xff]
    %v80 = vld [vmem:[#allocation2 + $0x170] sm:$0xff]
    %v81 = vld [vmem:[#allocation2 + $0x178] sm:$0xff]
    %v82 = vld [vmem:[#allocation2 + $0x180] sm:$0xff]
    %v83 = vld [vmem:[#allocation2 + $0x188] sm:$0xff]
    %v84 = vld [vmem:[#allocation2 + $0x190] sm:$0xff]
    %v85 = vld [vmem:[#allocation2 + $0x198] sm:$0xff]
    %v86 = vld [vmem:[#allocation2 + $0x1a0] sm:$0xff]
    %v87 = vld [vmem:[#allocation2 + $0x1a8] sm:$0xff]
    %v88 = vld [vmem:[#allocation2 + $0x1b0] sm:$0xff]
    %v89 = vld [vmem:[#allocation2 + $0x1b8] sm:$0xff]
    %v90 = vld [vmem:[#allocation2 + $0x1c0] sm:$0xff]
    %v91 = vld [vmem:[#allocation2 + $0x1c8] sm:$0xff]
    %v92 = vld [vmem:[#allocation2 + $0x1d0] sm:$0xff]
    %v93 = vld [vmem:[#allocation2 + $0x1d8] sm:$0xff]
    %v94 = vld [vmem:[#allocation2 + $0x1e0] sm:$0xff]
    %v95 = vld [vmem:[#allocation2 + $0x1e8] sm:$0xff]
    %v96 = vld [vmem:[#allocation2 + $0x1f0] sm:$0xff]
    %v97 = vld [vmem:[#allocation2 + $0x1f8] sm:$0xff]
    %v98 = vld [vmem:[#allocation5] sm:$0x1]
    %v99 = vadd.f32 %v34, %v35
    %v100 = vadd.f32 %v99, %v36
    %v101 = vadd.f32 %v100, %v37
    %v102 = vadd.f32 %v101, %v38
    %v103 = vadd.f32 %v102, %v39
    %v104 = vadd.f32 %v103, %v40
    %v105 = vadd.f32 %v104, %v41
    %v106 = vadd.f32 %v105, %v42
    %v107 = vadd.f32 %v106, %v43
    %v108 = vadd.f32 %v107, %v44
    %v109 = vadd.f32 %v108, %v45
    %v110 = vadd.f32 %v109, %v46
    %v111 = vadd.f32 %v110, %v47
    %v112 = vadd.f32 %v111, %v48
    %v113 = vadd.f32 %v112, %v49
    %v114 = vadd.f32 %v113, %v50
    %v115 = vadd.f32 %v114, %v51
    %v116 = vadd.f32 %v115, %v52
    %v117 = vadd.f32 %v116, %v53
    %v118 = vadd.f32 %v117, %v54
    %v119 = vadd.f32 %v118, %v55
    %v120 = vadd.f32 %v119, %v56
    %v121 = vadd.f32 %v120, %v57
    %v122 = vadd.f32 %v121, %v58
    %v123 = vadd.f32 %v122, %v59
    %v124 = vadd.f32 %v123, %v60
    %v125 = vadd.f32 %v124, %v61
    %v126 = vadd.f32 %v125, %v62
    %v127 = vadd.f32 %v126, %v63
    %v128 = vadd.f32 %v127, %v64
    %v129 = vadd.f32 %v128, %v65
    %v130 = vadd.f32 %v129, %v66
    %v131 = vadd.f32 %v130, %v67
    %v132 = vadd.f32 %v131, %v68
    %v133 = vadd.f32 %v132, %v69
    %v134 = vadd.f32 %v133, %v70
    %v135 = vadd.f32 %v134, %v71
    %v136 = vadd.f32 %v135, %v72
    %v137 = vadd.f32 %v136, %v73
    %v138 = vadd.f32 %v137, %v74
    %v139 = vadd.f32 %v138, %v75
    %v140 = vadd.f32 %v139, %v76
    %v141 = vadd.f32 %v140, %v77
    %v142 = vadd.f32 %v141, %v78
    %v143 = vadd.f32 %v142, %v79
    %v144 = vadd.f32 %v143, %v80
    %v145 = vadd.f32 %v144, %v81
    %v146 = vadd.f32 %v145, %v82
    %v147 = vadd.f32 %v146, %v83
    %v148 = vadd.f32 %v147, %v84
    %v149 = vadd.f32 %v148, %v85
    %v150 = vadd.f32 %v149, %v86
    %v151 = vadd.f32 %v150, %v87
    %v152 = vadd.f32 %v151, %v88
    %v153 = vadd.f32 %v152, %v89
    %v154 = vadd.f32 %v153, %v90
    %v155 = vadd.f32 %v154, %v91
    %v156 = vadd.f32 %v155, %v92
    %v157 = vadd.f32 %v156, %v93
    %v158 = vadd.f32 %v157, %v94
    %v159 = vadd.f32 %v158, %v95
    %v160 = vadd.f32 %v159, %v96
    %v161 = vadd.f32 %v160, %v97
    %v162 = vrot.slane %v161, 4
    %v163 = vadd.f32 %v161, %v162
    %v164 = vrot.slane %v163, 2
    %v165 = vadd.f32 %v163, %v164
    %v166 = vrot.slane %v165, 1
    %v167 = vadd.f32 %v165, %v166
    %v168 = vadd.f32 %v98, %v167
    %169 = vst [vmem:[#allocation5] sm:$0x1] %v168
    %v170 = vld [vmem:[#allocation6] sm:$0x1]
    %v171 = vmul.f32 %v34, %v34
    %v172 = vmul.f32 %v35, %v35
    %v173 = vmul.f32 %v36, %v36
    %v174 = vmul.f32 %v37, %v37
    %v175 = vmul.f32 %v38, %v38
    %v176 = vmul.f32 %v39, %v39
    %v177 = vmul.f32 %v40, %v40
    %v178 = vmul.f32 %v41, %v41
    %v179 = vmul.f32 %v42, %v42
    %v180 = vmul.f32 %v43, %v43
    %v181 = vmul.f32 %v44, %v44
    %v182 = vmul.f32 %v45, %v45
    %v183 = vmul.f32 %v46, %v46
    %v184 = vmul.f32 %v47, %v47
    %v185 = vmul.f32 %v48, %v48
    %v186 = vmul.f32 %v49, %v49
    %v187 = vmul.f32 %v50, %v50
    %v188 = vmul.f32 %v51, %v51
    %v189 = vmul.f32 %v52, %v52
    %v190 = vmul.f32 %v53, %v53
    %v191 = vmul.f32 %v54, %v54
    %v192 = vmul.f32 %v55, %v55
    %v193 = vmul.f32 %v56, %v56
    %v194 = vmul.f32 %v57, %v57
    %v195 = vmul.f32 %v58, %v58
    %v196 = vmul.f32 %v59, %v59
    %v197 = vmul.f32 %v60, %v60
    %v198 = vmul.f32 %v61, %v61
    %v199 = vmul.f32 %v62, %v62
    %v200 = vmul.f32 %v63, %v63
    %v201 = vmul.f32 %v64, %v64
    %v202 = vmul.f32 %v65, %v65
    %v203 = vmul.f32 %v66, %v66
    %v204 = vmul.f32 %v67, %v67
    %v205 = vmul.f32 %v68, %v68
    %v206 = vmul.f32 %v69, %v69
    %v207 = vmul.f32 %v70, %v70
    %v208 = vmul.f32 %v71, %v71
    %v209 = vmul.f32 %v72, %v72
    %v210 = vmul.f32 %v73, %v73
    %v211 = vmul.f32 %v74, %v74
    %v212 = vmul.f32 %v75, %v75
    %v213 = vmul.f32 %v76, %v76
    %v214 = vmul.f32 %v77, %v77
    %v215 = vmul.f32 %v78, %v78
    %v216 = vmul.f32 %v79, %v79
    %v217 = vmul.f32 %v80, %v80
    %v218 = vmul.f32 %v81, %v81
    %v219 = vmul.f32 %v82, %v82
    %v220 = vmul.f32 %v83, %v83
    %v221 = vmul.f32 %v84, %v84
    %v222 = vmul.f32 %v85, %v85
    %v223 = vmul.f32 %v86, %v86
    %v224 = vmul.f32 %v87, %v87
    %v225 = vmul.f32 %v88, %v88
    %v226 = vmul.f32 %v89, %v89
    %v227 = vmul.f32 %v90, %v90
    %v228 = vmul.f32 %v91, %v91
    %v229 = vmul.f32 %v92, %v92
    %v230 = vmul.f32 %v93, %v93
    %v231 = vmul.f32 %v94, %v94
    %v232 = vmul.f32 %v95, %v95
    %v233 = vmul.f32 %v96, %v96
    %v234 = vmul.f32 %v97, %v97
    %v235 = vadd.f32 %v171, %v172
    %v236 = vadd.f32 %v235, %v173
    %v237 = vadd.f32 %v236, %v174
    %v238 = vadd.f32 %v237, %v175
    %v239 = vadd.f32 %v238, %v176
    %v240 = vadd.f32 %v239, %v177
    %v241 = vadd.f32 %v240, %v178
    %v242 = vadd.f32 %v241, %v179
    %v243 = vadd.f32 %v242, %v180
    %v244 = vadd.f32 %v243, %v181
    %v245 = vadd.f32 %v244, %v182
    %v246 = vadd.f32 %v245, %v183
    %v247 = vadd.f32 %v246, %v184
    %v248 = vadd.f32 %v247, %v185
    %v249 = vadd.f32 %v248, %v186
    %v250 = vadd.f32 %v249, %v187
    %v251 = vadd.f32 %v250, %v188
    %v252 = vadd.f32 %v251, %v189
    %v253 = vadd.f32 %v252, %v190
    %v254 = vadd.f32 %v253, %v191
    %v255 = vadd.f32 %v254, %v192
    %v256 = vadd.f32 %v255, %v193
    %v257 = vadd.f32 %v256, %v194
    %v258 = vadd.f32 %v257, %v195
    %v259 = vadd.f32 %v258, %v196
    %v260 = vadd.f32 %v259, %v197
    %v261 = vadd.f32 %v260, %v198
    %v262 = vadd.f32 %v261, %v199
    %v263 = vadd.f32 %v262, %v200
    %v264 = vadd.f32 %v263, %v201
    %v265 = vadd.f32 %v264, %v202
    %v266 = vadd.f32 %v265, %v203
    %v267 = vadd.f32 %v266, %v204
    %v268 = vadd.f32 %v267, %v205
    %v269 = vadd.f32 %v268, %v206
    %v270 = vadd.f32 %v269, %v207
    %v271 = vadd.f32 %v270, %v208
    %v272 = vadd.f32 %v271, %v209
    %v273 = vadd.f32 %v272, %v210
    %v274 = vadd.f32 %v273, %v211
    %v275 = vadd.f32 %v274, %v212
    %v276 = vadd.f32 %v275, %v213
    %v277 = vadd.f32 %v276, %v214
    %v278 = vadd.f32 %v277, %v215
    %v279 = vadd.f32 %v278, %v216
    %v280 = vadd.f32 %v279, %v217
    %v281 = vadd.f32 %v280, %v218
    %v282 = vadd.f32 %v281, %v219
    %v283 = vadd.f32 %v282, %v220
    %v284 = vadd.f32 %v283, %v221
    %v285 = vadd.f32 %v284, %v222
    %v286 = vadd.f32 %v285, %v223
    %v287 = vadd.f32 %v286, %v224
    %v288 = vadd.f32 %v287, %v225
    %v289 = vadd.f32 %v288, %v226
    %v290 = vadd.f32 %v289, %v227
    %v291 = vadd.f32 %v290, %v228
    %v292 = vadd.f32 %v291, %v229
    %v293 = vadd.f32 %v292, %v230
    %v294 = vadd.f32 %v293, %v231
    %v295 = vadd.f32 %v294, %v232
    %v296 = vadd.f32 %v295, %v233
    %v297 = vadd.f32 %v296, %v234
    %v298 = vrot.slane %v297, 4
    %v299 = vadd.f32 %v297, %v298
    %v300 = vrot.slane %v299, 2
    %v301 = vadd.f32 %v299, %v300
    %v302 = vrot.slane %v301, 1
    %v303 = vadd.f32 %v301, %v302
    %v304 = vadd.f32 %v170, %v303
    %305 = vst [vmem:[#allocation6] sm:$0x1] %v304
    // Predicated region
    $region14: #{tpu_custom_call.1} parent=1 // pred_check
      _
    $region15: #{tpu_custom_call.1} parent=1 // pred_check_branch
      %307 = sbr.rel (0) target = $region17
    $region16: #{tpu_custom_call.1} parent=1 // pred_region
      %309 = vsyncadd [#allocation4], 0
      %s311 = sshll.u32 [#allocation5], 4
      %s312 = int_to_ptr.vmem [resolvable:$true] %s311
      %s313 = sshll.u32 %s1, 4
      %s314 = int_to_ptr.hbm [resolvable:$true] %s313
      %316 = dma.vmem_to_hbm [thread:$0]  %s312, 16, %s314, [#allocation4]
    $region17: #{tpu_custom_call.1} parent=1 // pred_fallthru
      _
    // Predicated region
    $region18: #{tpu_custom_call.1} parent=1 // pred_check
      _
    $region19: #{tpu_custom_call.1} parent=1 // pred_check_branch
      %318 = sbr.rel (0) target = $region21
    $region20: #{tpu_custom_call.1} parent=1 // pred_region
      %320 = vsyncadd [#allocation7], 0
      %s322 = sshll.u32 [#allocation6], 4
      %s323 = int_to_ptr.vmem [resolvable:$true] %s322
      %s324 = sshll.u32 %s2, 4
      %s325 = int_to_ptr.hbm [resolvable:$true] %s324
      %327 = dma.vmem_to_hbm [thread:$0]  %s323, 16, %s325, [#allocation7]
    $region21: #{tpu_custom_call.1} parent=1 // pred_fallthru
      _
    // Predicated region
    $region22: #{tpu_custom_call.1} parent=1 // pred_check
      _
    $region23: #{tpu_custom_call.1} parent=1 // pred_check_branch
      %329 = sbr.rel (0) target = $region25
    $region24: #{tpu_custom_call.1} parent=1 // pred_region
      %331 = dma.done [#allocation4], 16
    $region25: #{tpu_custom_call.1} parent=1 // pred_fallthru
      _
    // Predicated region
    $region26: #{tpu_custom_call.1} parent=1 // pred_check
      _
    $region27: #{tpu_custom_call.1} parent=1 // pred_check_branch
      %333 = sbr.rel (0) target = $region29
    $region28: #{tpu_custom_call.1} parent=1 // pred_region
      %335 = dma.done [#allocation7], 16
    $region29: #{tpu_custom_call.1} parent=1 // pred_fallthru
      _
    %336 = vsyncpa [#allocation3], 1
    %337 = vsyncpa [#allocation4], 1
    %338 = vsyncpa [#allocation7], 1

</llo_original>
